<compile_context>
chip_gen: v5e
topology: v5e:2x2
jax: 0.10.0
libtpu: 0.0.40
codegen_flags: <defaults>
</compile_context>

<pallas_src>
import math
import numpy as np
import jax
import jax.numpy as jnp
from jax.experimental import pallas as pl
from jax.experimental.pallas import tpu as pltpu


# ---------------------------------------------------------------------------
# Parameter / buffer construction (deterministic, mirrors nn.Module.__init__)
# ---------------------------------------------------------------------------
def make_pe(scale_factor, d_model, max_seq_length):
    position = np.arange(max_seq_length, dtype=np.float32)[:, None]
    div_term = np.exp(
        np.arange(0, d_model, 2, dtype=np.float32) * -(math.log(10000.0) / d_model)
    )
    pe = np.zeros((max_seq_length, d_model), dtype=np.float32)
    pe[:, 0::2] = np.sin(position * div_term)
    pe[:, 1::2] = np.cos(position * div_term)
    return (pe * scale_factor).astype(np.float32)


def make_view_map(feature_space_shape):
    width = int(math.sqrt(feature_space_shape[1]))
    height = int(math.sqrt(feature_space_shape[1]))
    cx = (height - 1) / 2
    cy = (width - 1) / 2
    vm = np.zeros((width, height), dtype=np.int32)
    for i in range(width):
        for j in range(height):
            x = j - cx
            y = cy - i
            deg = math.degrees(math.atan2(y, x))
            if -30 < deg < 30:
                vm[i, j] = 0
            elif 30 < deg < 90:
                vm[i, j] = 1
            elif 90 < deg < 150:
                vm[i, j] = 2
            elif (-180 < deg < -150) or (150 < deg < 180):
                vm[i, j] = 3
            elif -150 < deg < -90:
                vm[i, j] = 4
            elif -90 < deg < -30:
                vm[i, j] = 5
    return vm


def scramble(p, spatial, d_model):
    """torch: .view(wdm, wdm, spatial).permute(2, 0, 1) then flatten(start_dim=2)."""
    wdm = int(math.sqrt(d_model))
    p = np.ascontiguousarray(p, dtype=np.float32)
    return p.reshape(wdm, wdm, spatial).transpose(2, 0, 1).reshape(spatial, wdm * wdm)


# ---------------------------------------------------------------------------
# Host-side positional LUT (one scrambled (S, D) slab per DISTINCT view value)
# ---------------------------------------------------------------------------
_POS_LUT_CACHE = {}


def _build_pos_lut(view, pe, view_map, spatial, d_model):
    """Cached per (view, pe, view_map): repeated calls pay no host/transfer cost.
    NOTE: `view` is consumed as a static Python tuple; a runtime device-array
    `view` would force a host sync / rebuild per distinct combination."""
    key = (view, id(pe), id(view_map), spatial, d_model)
    hit = _POS_LUT_CACHE.get(key)
    if hit is not None:
        return hit

    pe = np.asarray(pe, dtype=np.float32)
    indices = np.asarray(view_map, dtype=np.int64).reshape(-1)
    assert indices.shape[0] == spatial, "view_map must flatten to `spatial` entries"
    pos_full = pe[indices]                                  # (S, D)
    uniq = sorted(set(view))
    rows = []
    for v in uniq:
        if v == 6:
            row = pos_full
        else:
            # Faithful to torch: exact float32 elementwise-equality mask
            # (inherited brittle behavior, documented).
            # TODO(synk): torch.save('pos_enc_vec.pt') side-effect in this torch
            # branch is a file write and is intentionally skipped.
            pev = pe[v][None, :]
            row = np.where(pos_full == pev, pev, np.float32(0.0))
        rows.append(scramble(row, spatial, d_model))
    lut = np.stack(rows, axis=0).astype(np.float32)         # (n_lut, S, D)
    lut_idx = np.asarray([uniq.index(v) for v in view], dtype=np.int32)

    result = (jnp.asarray(lut), lut_idx)
    _POS_LUT_CACHE[key] = result
    return result


# ---------------------------------------------------------------------------
# VMEM budgeting (v7x has 64 MiB per core vs 128 MiB on v5e/v6e)
# ---------------------------------------------------------------------------
def _vmem_capacity_bytes():
    try:
        return int(pltpu.get_tpu_info().vmem_capacity_bytes)
    except Exception:
        return 64 * 1024 * 1024  # most constrained generation (v7x)


def _choose_spatial_tile(spatial, d_model, in_item, out_item, budget_bytes):
    """Largest spatial tile TS dividing `spatial` whose single-buffered working
    set (x col-slab + pos row-slab + out row-slab) fits the budget.  TS is a
    multiple of 128 (aligned x-operand lanes) unless the whole S fits."""
    per_row = d_model * (in_item + 4 + out_item)
    max_ts = max(1, budget_bytes // per_row)
    if spatial <= max_ts:
        return spatial
    best = 0
    t = 128
    while t <= max_ts:
        if spatial % t == 0:
            best = t
        t += 128
    if best:
        return best
    # TODO(synk): spatial has no 128-multiple divisor under budget; fall back to
    # a whole-spatial block (raises VMEM pressure) rather than emit edge tiles.
    return spatial


# ---------------------------------------------------------------------------
# Pallas kernel: out[ts, :] = transpose(x_tile) + pos_tile   (fused permute+add)
# ---------------------------------------------------------------------------
def pe_fused_add_kernel(order_ref, lidx_ref, x_ref, pos_ref, o_ref):
    # order_ref / lidx_ref are consumed by the index_maps (scalar prefetch).
    del order_ref, lidx_ref
    # x_ref: (d_model, TS) tile of x in its native NC(HW) layout.  Transpose on
    # the XLU (idle slot; the body is otherwise a single VPU add), add pos, store.
    xt = jnp.transpose(x_ref[...], (1, 0)).astype(jnp.float32)   # (TS, d_model)
    o_ref[...] = (xt + pos_ref[...]).astype(o_ref.dtype)


def positional_encoding_forward(x, view, pe, view_map):
    bs, c, h, w = x.shape
    spatial = h * w
    max_seq_length, d_model = pe.shape
    wdm = int(math.sqrt(d_model))
    assert wdm * wdm == d_model, "d_model must be a perfect square (torch .view requires it)"
    assert c == d_model, "channels must equal d_model for the residual add to line up"
    view = tuple(int(v) for v in view)
    assert len(view) == bs
    for v in view:
        assert v == 6 or 0 <= v < max_seq_length, f"view value {v} out of range"

    lut_dev, lut_idx = _build_pos_lut(view, pe, view_map, spatial, d_model)
    n_lut = int(lut_dev.shape[0])

    # Batch innermost + grouped by LUT index: consecutive grid steps reuse the
    # identical pos block, so Pallas skips its re-DMA (pos traffic ~ n_lut*L).
    order = np.argsort(lut_idx, kind="stable").astype(np.int32)
    lidx_sorted = lut_idx[order].astype(np.int32)

    out_dtype = jnp.result_type(x.dtype, jnp.float32)   # torch promotion (pe is f32)
    in_item = np.dtype(x.dtype).itemsize
    out_item = np.dtype(out_dtype).itemsize

    cap = _vmem_capacity_bytes()
    budget = max(2 * 1024 * 1024, min(4 * 1024 * 1024, cap // 16))
    ts = _choose_spatial_tile(spatial, d_model, in_item, out_item, budget)
    per_step = d_model * ts * (in_item + 4 + out_item)
    vmem_limit = int(min(cap * 3 // 4, max(32 * 1024 * 1024, 4 * per_step)))

    # Free row-major collapse of (C, H, W) -> (C, S); no data movement.
    x3 = x.reshape(bs, c, spatial)

    grid = (spatial // ts, bs)
    cost = pl.CostEstimate(
        flops=bs * spatial * d_model,
        transcendentals=0,
        bytes_accessed=(bs * spatial * d_model * (in_item + out_item)
                        + n_lut * spatial * d_model * 4),
    )

    # NOTE: output lane width is d_model; for d_model a multiple of 128 (the
    # realistic config, and the demo below) stores are full-lane / unmasked.
    # TODO(synk): for d_model < 128 the (TS, D) tile could be folded in-kernel
    # to a (TS/fold, D*fold) lane-dense slab before the store; not done here to
    # keep the in-kernel reshape/relayout off the compile-risk path.
    out = pl.pallas_call(
        pe_fused_add_kernel,
        out_shape=jax.ShapeDtypeStruct((bs, spatial, d_model), out_dtype),
        grid_spec=pltpu.PrefetchScalarGridSpec(
            num_scalar_prefetch=2,
            grid=grid,
            in_specs=[
                # x in native (B, d_model, S) layout; permute fused in-kernel.
                pl.BlockSpec((pl.Squeezed(), d_model, ts),
                             lambda t, b, ord_ref, idx_ref: (ord_ref[b], 0, t)),
                # per-view positional LUT slab, selected via scalar prefetch.
                pl.BlockSpec((pl.Squeezed(), ts, d_model),
                             lambda t, b, ord_ref, idx_ref: (idx_ref[b], t, 0)),
            ],
            out_specs=pl.BlockSpec((pl.Squeezed(), ts, d_model),
                                   lambda t, b, ord_ref, idx_ref: (ord_ref[b], t, 0)),
        ),
        compiler_params=pltpu.CompilerParams(
            dimension_semantics=("parallel", "parallel"),
            vmem_limit_bytes=vmem_limit,
        ),
        cost_estimate=cost,
    )(jnp.asarray(order), jnp.asarray(lidx_sorted), x3, lut_dev)

    # torch: x.reshape(feature_space_shape)  (raw reshape, NO inverse permute)
    return out.reshape(x.shape)


# ---------------------------------------------------------------------------
# Pure numpy reference (mirrors the torch forward exactly) for self-check
# ---------------------------------------------------------------------------
def reference_forward(x, view, pe, view_map):
    bs, c, h, w = x.shape
    spatial = h * w
    d_model = pe.shape[1]
    wdm = int(math.sqrt(d_model))
    xp = x.reshape(bs, c, spatial).transpose(0, 2, 1)        # (B, S, D)
    indices = view_map.reshape(-1)
    pos_all = []
    for v in view:
        pos = pe[indices]                                    # (S, D)
        if v != 6:
            pev = pe[v][None, :]
            pos = np.where(pos == pev, pev, np.float32(0.0))
        pos = pos.reshape(wdm, wdm, spatial).transpose(2, 0, 1).reshape(spatial, d_model)
        pos_all.append(pos[None])
    pos_all = np.concatenate(pos_all, axis=0)                # (B, S, D)
    out = xp.astype(np.float32) + pos_all
    return out.reshape(x.shape)


if __name__ == "__main__":
    # Module config consistent with the forward semantics: d_model a perfect
    # square, channels == d_model, spatial a perfect square.  d_model = 256
    # keeps the output lane-dense (multiple of 128) on the fused path.
    scale_factor = 2.0
    d_model = 256                 # perfect square -> wdm = 16
    max_seq_length = 8
    H = W = 16                    # spatial = 256 (view_map is 16x16)
    channels = d_model
    feature_space_shape = (channels, H * W)
    bs = 2
    view = (6, 2)                 # one "all views", one masked single view

    pe = make_pe(scale_factor, d_model, max_seq_length)
    view_map = make_view_map(feature_space_shape)

    key = jax.random.PRNGKey(0)
    x = jax.random.normal(key, (bs, channels, H, W), dtype=jnp.float32)

    out = positional_encoding_forward(x, view, pe, view_map)
    out = jax.block_until_ready(out)

    ref = reference_forward(np.asarray(x), view, pe, view_map)
    assert out.shape == x.shape
    np.testing.assert_allclose(np.asarray(out), ref, rtol=1e-6, atol=1e-6)
    print("KERNEL_OK")
</pallas_src>

<mosaic_0001>
module attributes {stable_mosaic.version = 11 : i64} {
  func.func @pe_fused_add_kernel(%arg0: i32, %arg1: i32, %arg2: memref<2xi32, #tpu.memory_space<smem>>, %arg3: memref<2xi32, #tpu.memory_space<smem>>, %arg4: memref<1x256x256xf32, #tpu.memory_space<vmem>>, %arg5: memref<1x256x256xf32, #tpu.memory_space<vmem>>, %arg6: memref<1x256x256xf32, #tpu.memory_space<vmem>>) attributes {dimension_semantics = [#tpu.dimension_semantics<parallel>, #tpu.dimension_semantics<parallel>], iteration_bounds = array<i64: 1, 2>, scalar_prefetch = 2 : i64, scratch_operands = 0 : i64, tpu.core_type = #tpu.core_type<tc>, window_params = [{transform_indices = @transform_0, window_bounds = array<i64: 1, 256, 256>}, {transform_indices = @transform_1, window_bounds = array<i64: 1, 256, 256>}, {transform_indices = @transform_2, window_bounds = array<i64: 1, 256, 256>}]} {
    %c0 = arith.constant 0 : index
    %c0_0 = arith.constant 0 : index
    %c0_1 = arith.constant 0 : index
    %0 = vector.load %arg4[%c0, %c0_0, %c0_1] : memref<1x256x256xf32, #tpu.memory_space<vmem>>, vector<1x256x256xf32>
    %1 = vector.shape_cast %0 : vector<1x256x256xf32> to vector<256x256xf32>
    %2 = tpu.transpose %1, [1, 0] : vector<256x256xf32> -> vector<256x256xf32>
    %c0_2 = arith.constant 0 : index
    %c0_3 = arith.constant 0 : index
    %c0_4 = arith.constant 0 : index
    %3 = vector.load %arg5[%c0_2, %c0_3, %c0_4] : memref<1x256x256xf32, #tpu.memory_space<vmem>>, vector<1x256x256xf32>
    %4 = vector.shape_cast %3 : vector<1x256x256xf32> to vector<256x256xf32>
    %5 = arith.addf %2, %4 : vector<256x256xf32>
    %c0_5 = arith.constant 0 : index
    %c0_6 = arith.constant 0 : index
    %c0_7 = arith.constant 0 : index
    %6 = vector.load %arg6[%c0_5, %c0_6, %c0_7] : memref<1x256x256xf32, #tpu.memory_space<vmem>>, vector<1x256x256xf32>
    %7 = vector.shape_cast %6 : vector<1x256x256xf32> to vector<256x256xf32>
    %8 = vector.shape_cast %5 : vector<256x256xf32> to vector<1x256x256xf32>
    tpu.vector_store %arg6[%c0_5, %c0_6, %c0_7], %8 {strides = array<i32>} : memref<1x256x256xf32, #tpu.memory_space<vmem>>, vector<1x256x256xf32>,
    return
  }
  func.func @transform_0(%arg0: i32, %arg1: i32, %arg2: memref<2xi32, #tpu.memory_space<smem>>, %arg3: memref<2xi32, #tpu.memory_space<smem>>) -> (i32, i32, i32) {
    %0 = arith.index_cast %arg1 : i32 to index
    %1 = memref.load %arg2[%0] : memref<2xi32, #tpu.memory_space<smem>>
    %c0_i32 = arith.constant 0 : i32
    %c0_i32_0 = arith.constant 0 : i32
    return %1, %c0_i32, %arg0 : i32, i32, i32
  }
  func.func @transform_1(%arg0: i32, %arg1: i32, %arg2: memref<2xi32, #tpu.memory_space<smem>>, %arg3: memref<2xi32, #tpu.memory_space<smem>>) -> (i32, i32, i32) {
    %0 = arith.index_cast %arg1 : i32 to index
    %1 = memref.load %arg3[%0] : memref<2xi32, #tpu.memory_space<smem>>
    %c0_i32 = arith.constant 0 : i32
    %c0_i32_0 = arith.constant 0 : i32
    return %1, %arg0, %c0_i32 : i32, i32, i32
  }
  func.func @transform_2(%arg0: i32, %arg1: i32, %arg2: memref<2xi32, #tpu.memory_space<smem>>, %arg3: memref<2xi32, #tpu.memory_space<smem>>) -> (i32, i32, i32) {
    %0 = arith.index_cast %arg1 : i32 to index
    %1 = memref.load %arg2[%0] : memref<2xi32, #tpu.memory_space<smem>>
    %c0_i32 = arith.constant 0 : i32
    %c0_i32_0 = arith.constant 0 : i32
    return %1, %arg0, %c0_i32 : i32, i32, i32
  }
}

</mosaic_0001>

<llo_original>
// kernel: tpu_custom_call.1
$region0: #{tpu_custom_call.1}
  #allocation0 [shape = 'u32[]', space=smem, size = 0x4, offset = 0x4, fixed_abs, tag = 'smem constant byte address 0x4 - core index']
  #allocation1 [shape = 'u32[72,128]{1,0:T(1,128)}', space=vmem, size = 0x9000, scoped, tag = 'internal scratch']
  #allocation2 [shape = 's32[1]{0}', space=sflag, size = 0x4, scoped, tag = 'scoped memory for tpu_custom_call.1']
  #allocation3 [shape = 'u8[512]{0}', space=smem, size = 0x200, scoped, tag = 'prefetched SMEM operand 0']
  #allocation4 [shape = 'u8[512]{0}', space=smem, size = 0x200, scoped, tag = 'prefetched SMEM operand 1']
  %s0 = inlined_call_operand.hbm [shape: s32[2], index: 0, kind: input, shape index: {}]
  %s1 = inlined_call_operand.hbm [shape: s32[2], index: 1, kind: input, shape index: {}]
  %s2 = inlined_call_operand.hbm [shape: f32[2,256,256], index: 2, kind: input, shape index: {}]
  %s3 = inlined_call_operand.hbm [shape: f32[2,256,256], index: 3, kind: input, shape index: {}]
  %s4 = inlined_call_operand.hbm [shape: f32[2,256,256], index: 4, kind: output, shape index: {}]
  %s5 = sld [smem:[#allocation0]]
  $region49: #{tpu_custom_call.1} parent=0
    _
  %s7 = ssub.s32 1, %s5
  %s8 = scalar_select 0, %s7, %s5
  %s10 = sshll.u32 %s0, 4
  %s11 = int_to_ptr.hbm [resolvable:$true] %s10
  %13 = dma.hbm_to_smem %s11, 16, [#allocation3], [#allocation2]
  %s15 = sshll.u32 %s1, 4
  %s16 = int_to_ptr.hbm [resolvable:$true] %s15
  %18 = dma.hbm_to_smem %s16, 16, [#allocation4], [#allocation2]
  %20 = dma.done [#allocation2], 32
  %21 = sfence
  $region1: #{tpu_custom_call.1} parent=0
    #allocation5 [shape = 'u8[524288]{0}', space=vmem, size = 0x80000, scoped, tag = 'input window, operand 2']
    #allocation6 [shape = 's32[2]{0}', space=sflag, size = 0x8, scoped, tag = 'scoped memory for tpu_custom_call.1']
    #allocation7 [shape = 's32[2]{0}', space=sflag, size = 0x8, scoped, tag = 'scoped memory for tpu_custom_call.1']
    #allocation8 [shape = 'u8[524288]{0}', space=vmem, size = 0x80000, scoped, tag = 'input window, operand 3']
    #allocation9 [shape = 's32[2]{0}', space=sflag, size = 0x8, scoped, tag = 'scoped memory for tpu_custom_call.1']
    #allocation10 [shape = 'u8[524288]{0}', space=vmem, size = 0x80000, scoped, tag = 'output window, operand 0']
    %22 = vsyncpa [#allocation6], 0
    %s23 = scalar_lea.sflag [#allocation6], 1
    %24 = vsyncpa %s23, 0
    %25 = vsyncpa [#allocation9], 0
    %s26 = scalar_lea.sflag [#allocation9], 1
    %27 = vsyncpa %s26, 0
    %28 = vsyncpa [#allocation7], 0
    %s29 = scalar_lea.sflag [#allocation7], 1
    %30 = vsyncpa %s29, 0
    loop: start=0, step=1, limit=4
    $region2: #{tpu_custom_call.1} parent=1 // loop_pre_header
      _
    $region3: #{tpu_custom_call.1} parent=1 // loop_header
      %s32 = sphi 0, %s36
      %p33 = scmp.ge.s32.totalorder %s32, 4
      %s39 = sphi 0, %s51
      %s40 = sphi 0, %s47
      %s41 = sphi 0, %s39
      %s42 = sphi 0, %s40
      %s43 = sphi 0, %s41
      %s44 = sphi 0, %s42
      %s58 = sphi 0, %s60
      %s61 = sphi 0, %s58
      %s62 = sphi 0, %s61
      %s78 = sphi 0, %s62
      %s88 = sphi 0, %s90
      %s91 = sphi 0, %s88
      %s92 = sphi 0, %s91
      %s108 = sphi 0, %s92
      %s118 = sphi 0, %s120
      %s121 = sphi 0, %s118
      %s122 = sphi 0, %s121
      %s138 = sphi 0, %s122
    $region4: #{tpu_custom_call.1} parent=1 // loop_header_branch
      %35 = sbr.rel (%p33) target = $region8
    $region5: #{tpu_custom_call.1} parent=1 // loop_body
      %s37 = ssub.s32 %s32, 1
      %s38 = ssub.s32 %s32, 2
      %s45 = sadd.s32 1, %s40
      %p46 = scmp.ge.s32.totalorder %s45, 2
      %s47 = scalar_select %p46, 0, %s45
      %s48 = sadd.s32 1, %s39
      %s49 = scalar_select %p46, %s48, %s39
      %p50 = scmp.ge.s32.totalorder %s49, 1
      %s51 = scalar_select %p50, 0, %s49
      %s52 = sld [smem:[#allocation3 + %s40]]
      %s53 = sld [smem:[#allocation3 + %s47]]
      %s54 = ssub.s32 %s52, %s53
      %s55 = ssub.s32 %s39, %s51
      %s56 = sor.u32 %s54, %s55
      %p57 = scmp.eq.s32.totalorder %s56, 0
      %s59 = sadd.s32 %s58, 1
      %s60 = scalar_select %p57, %s58, %s59
      %p63 = pneg %p57
      %p64 = scmp.eq.s32.totalorder %s32, 1
      %p65 = por %p63, %p64
      %p66 = scmp.ne.s32.totalorder %s58, %s61
      %p67 = scmp.eq.s32.totalorder %s32, 0
      %p68 = por %p66, %p67
      %p69 = scmp.ne.s32.totalorder %s58, %s61
      %p70 = scmp.eq.s32.totalorder %s37, 1
      %p71 = por %p69, %p70
      %p72 = scmp.ne.s32.totalorder %s61, %s62
      %p73 = scmp.eq.s32.totalorder %s37, 0
      %p74 = por %p72, %p73
      %p75 = scmp.ne.s32.totalorder %s61, %s62
      %p76 = scmp.eq.s32.totalorder %s38, 1
      %p77 = por %p75, %p76
      %p79 = scmp.ne.s32.totalorder %s62, %s78
      %p80 = scmp.eq.s32.totalorder %s38, 0
      %p81 = por %p79, %p80
      %s82 = sld [smem:[#allocation4 + %s40]]
      %s83 = sld [smem:[#allocation4 + %s47]]
      %s84 = ssub.s32 %s82, %s83
      %s85 = ssub.s32 %s39, %s51
      %s86 = sor.u32 %s84, %s85
      %p87 = scmp.eq.s32.totalorder %s86, 0
      %s89 = sadd.s32 %s88, 1
      %s90 = scalar_select %p87, %s88, %s89
      %p93 = pneg %p87
      %p94 = scmp.eq.s32.totalorder %s32, 1
      %p95 = por %p93, %p94
      %p96 = scmp.ne.s32.totalorder %s88, %s91
      %p97 = scmp.eq.s32.totalorder %s32, 0
      %p98 = por %p96, %p97
      %p99 = scmp.ne.s32.totalorder %s88, %s91
      %p100 = scmp.eq.s32.totalorder %s37, 1
      %p101 = por %p99, %p100
      %p102 = scmp.ne.s32.totalorder %s91, %s92
      %p103 = scmp.eq.s32.totalorder %s37, 0
      %p104 = por %p102, %p103
      %p105 = scmp.ne.s32.totalorder %s91, %s92
      %p106 = scmp.eq.s32.totalorder %s38, 1
      %p107 = por %p105, %p106
      %p109 = scmp.ne.s32.totalorder %s92, %s108
      %p110 = scmp.eq.s32.totalorder %s38, 0
      %p111 = por %p109, %p110
      %s112 = sld [smem:[#allocation3 + %s40]]
      %s113 = sld [smem:[#allocation3 + %s47]]
      %s114 = ssub.s32 %s112, %s113
      %s115 = ssub.s32 %s39, %s51
      %s116 = sor.u32 %s114, %s115
      %p117 = scmp.eq.s32.totalorder %s116, 0
      %s119 = sadd.s32 %s118, 1
      %s120 = scalar_select %p117, %s118, %s119
      %p123 = pneg %p117
      %p124 = scmp.eq.s32.totalorder %s32, 1
      %p125 = por %p123, %p124
      %p126 = scmp.ne.s32.totalorder %s118, %s121
      %p127 = scmp.eq.s32.totalorder %s32, 0
      %p128 = por %p126, %p127
      %p129 = scmp.ne.s32.totalorder %s118, %s121
      %p130 = scmp.eq.s32.totalorder %s37, 1
      %p131 = por %p129, %p130
      %p132 = scmp.ne.s32.totalorder %s121, %s122
      %p133 = scmp.eq.s32.totalorder %s37, 0
      %p134 = por %p132, %p133
      %p135 = scmp.ne.s32.totalorder %s121, %s122
      %p136 = scmp.eq.s32.totalorder %s38, 1
      %p137 = por %p135, %p136
      %p139 = scmp.ne.s32.totalorder %s122, %s138
      %p140 = scmp.eq.s32.totalorder %s38, 0
      %p141 = por %p139, %p140
      %p142 = scmp.le.s32.totalorder 1, %s32
      %p143 = scmp.lt.s32.totalorder %s32, 3
      %p144 = pnand %p142, %p143
      %p145 = pneg %p144
      // Predicated region
      $region9: #{tpu_custom_call.1} parent=5 // pred_check
        _
      $region10: #{tpu_custom_call.1} parent=5 // pred_check_branch
        %147 = sbr.rel (%p144) target = $region12
      $region11: #{tpu_custom_call.1} parent=5 // pred_region
        %s148 = ssub.s32 %s32, 1
      $region12: #{tpu_custom_call.1} parent=5 // pred_fallthru
        _
      %p149 = scmp.lt.s32.totalorder %s32, 2
      // Predicated region
      $region13: #{tpu_custom_call.1} parent=5 // pred_check
        %p150 = pneg %p149
      $region14: #{tpu_custom_call.1} parent=5 // pred_check_branch
        %152 = sbr.rel (%p150) target = $region16
      $region15: #{tpu_custom_call.1} parent=5 // pred_region
        // Predicated region
        $region17: #{tpu_custom_call.1} parent=15 // pred_check
          %p153 = pneg %p68
        $region18: #{tpu_custom_call.1} parent=15 // pred_check_branch
          %155 = sbr.rel (%p153) target = $region20
        $region19: #{tpu_custom_call.1} parent=15 // pred_region
          %s156 = sand.u32 %s58, 1
          %s157 = scalar_lea.sflag [#allocation6], %s156
          %s158 = sand.u32 %s58, 1
          %s159 = smul.addr %s158, 512
          %s160 = scalar_lea.vmem [#allocation5], %s159
          %s161 = sld [smem:[#allocation3 + %s40]]
          %s162 = smul.u32 2, %s39
          %164 = vsyncadd %s157, 0
          %s165 = smul.addr %s161, 64
          %s166 = sadd.s32 %s162, %s165
          %s167 = smul.addr %s166, 8
          %s168 = scalar_lea.hbm %s2, %s167
          %s169 = sshll.u32 %s168, 4
          %s170 = int_to_ptr.hbm [resolvable:$true] %s169
          %s171 = sshll.u32 %s160, 4
          %s172 = int_to_ptr.vmem [resolvable:$true] %s171
          %177 = dma.hbm_to_vmem [thread:$0]  %s170, 8192, %s172, %s157, 256, 256, 16
        $region20: #{tpu_custom_call.1} parent=15 // pred_fallthru
          _
        // Predicated region
        $region21: #{tpu_custom_call.1} parent=15 // pred_check
          %p178 = pneg %p98
        $region22: #{tpu_custom_call.1} parent=15 // pred_check_branch
          %180 = sbr.rel (%p178) target = $region24
        $region23: #{tpu_custom_call.1} parent=15 // pred_region
          %s181 = sand.u32 %s88, 1
          %s182 = scalar_lea.sflag [#allocation9], %s181
          %s183 = sand.u32 %s88, 1
          %s184 = smul.addr %s183, 512
          %s185 = scalar_lea.vmem [#allocation8], %s184
          %s186 = sld [smem:[#allocation4 + %s40]]
          %s187 = smul.u32 32, %s39
          %189 = vsyncadd %s182, 0
          %s190 = smul.addr %s187, 2
          %s191 = smul.addr %s186, 64
          %s192 = sadd.s32 %s190, %s191
          %s193 = smul.addr %s192, 8
          %s194 = scalar_lea.hbm %s3, %s193
          %s195 = sshll.u32 %s194, 4
          %s196 = int_to_ptr.hbm [resolvable:$true] %s195
          %s197 = sshll.u32 %s185, 4
          %s198 = int_to_ptr.vmem [resolvable:$true] %s197
          %203 = dma.hbm_to_vmem [thread:$0]  %s196, 8192, %s198, %s182, 256, 256, 16
        $region24: #{tpu_custom_call.1} parent=15 // pred_fallthru
          _
      $region16: #{tpu_custom_call.1} parent=5 // pred_fallthru
        _
      %p204 = scmp.le.s32.totalorder 1, %s32
      %p205 = scmp.lt.s32.totalorder %s32, 3
      %p206 = pnand %p204, %p205
      %p207 = pneg %p206
      // Predicated region
      $region25: #{tpu_custom_call.1} parent=5 // pred_check
        _
      $region26: #{tpu_custom_call.1} parent=5 // pred_check_branch
        %209 = sbr.rel (%p206) target = $region28
      $region27: #{tpu_custom_call.1} parent=5 // pred_region
        %s210 = ssub.s32 %s32, 1
        %s211 = sand.u32 %s61, 1
        %s212 = scalar_lea.sflag [#allocation6], %s211
        %s213 = sand.u32 %s61, 1
        %s214 = smul.addr %s213, 512
        %s215 = scalar_lea.vmem [#allocation5], %s214
        // Predicated region
        $region29: #{tpu_custom_call.1} parent=27 // pred_check
          %p216 = pneg %p74
        $region30: #{tpu_custom_call.1} parent=27 // pred_check_branch
          %218 = sbr.rel (%p216) target = $region32
        $region31: #{tpu_custom_call.1} parent=27 // pred_region
          %220 = dma.done %s212, 8192
        $region32: #{tpu_custom_call.1} parent=27 // pred_fallthru
          _
        %s221 = sand.u32 %s91, 1
        %s222 = scalar_lea.sflag [#allocation9], %s221
        %s223 = sand.u32 %s91, 1
        %s224 = smul.addr %s223, 512
        %s225 = scalar_lea.vmem [#allocation8], %s224
        // Predicated region
        $region33: #{tpu_custom_call.1} parent=27 // pred_check
          %p226 = pneg %p104
        $region34: #{tpu_custom_call.1} parent=27 // pred_check_branch
          %228 = sbr.rel (%p226) target = $region36
        $region35: #{tpu_custom_call.1} parent=27 // pred_region
          %230 = dma.done %s222, 8192
        $region36: #{tpu_custom_call.1} parent=27 // pred_fallthru
          _
        %s231 = sand.u32 %s61, 1
        %s232 = scalar_lea.sflag [#allocation6], %s231
        %s233 = sand.u32 %s61, 1
        %s234 = smul.addr %s233, 512
        %s235 = scalar_lea.vmem [#allocation5], %s234
        %p236 = pneg %p74
        %p237 = pneg %p71
        %s238 = sand.u32 %s91, 1
        %s239 = scalar_lea.sflag [#allocation9], %s238
        %s240 = sand.u32 %s91, 1
        %s241 = smul.addr %s240, 512
        %s242 = scalar_lea.vmem [#allocation8], %s241
        %p243 = pneg %p104
        %p244 = pneg %p101
        %p245 = pneg %p134
        %p246 = pneg %p131
        %s247 = sand.u32 %s121, 1
        %s248 = scalar_lea.sflag [#allocation7], %s247
        %s249 = sand.u32 %s121, 1
        %s250 = smul.addr %s249, 512
        %s251 = scalar_lea.vmem [#allocation10], %s250
        %s252 = sld [smem:[#allocation3 + %s42]]
        %s253 = smul.u32 2, %s41
        %s254 = sld [smem:[#allocation4 + %s42]]
        %s255 = smul.u32 32, %s41
        %s256 = sld [smem:[#allocation3 + %s42]]
        %s257 = smul.u32 32, %s41
        %v258 = vld [vmem:[%s215] sm:$0xff]
        %v259 = vld [vmem:[%s215 + $0x8] sm:$0xff]
        %v260 = vld [vmem:[%s215 + $0x10] sm:$0xff]
        %v261 = vld [vmem:[%s215 + $0x18] sm:$0xff]
        %v262 = vld [vmem:[%s215 + $0x20] sm:$0xff]
        %v263 = vld [vmem:[%s215 + $0x28] sm:$0xff]
        %v264 = vld [vmem:[%s215 + $0x30] sm:$0xff]
        %v265 = vld [vmem:[%s215 + $0x38] sm:$0xff]
        %v266 = vld [vmem:[%s215 + $0x40] sm:$0xff]
        %v267 = vld [vmem:[%s215 + $0x48] sm:$0xff]
        %v268 = vld [vmem:[%s215 + $0x50] sm:$0xff]
        %v269 = vld [vmem:[%s215 + $0x58] sm:$0xff]
        %v270 = vld [vmem:[%s215 + $0x60] sm:$0xff]
        %v271 = vld [vmem:[%s215 + $0x68] sm:$0xff]
        %v272 = vld [vmem:[%s215 + $0x70] sm:$0xff]
        %v273 = vld [vmem:[%s215 + $0x78] sm:$0xff]
        %v274 = vld [vmem:[%s215 + $0x80] sm:$0xff]
        %v275 = vld [vmem:[%s215 + $0x88] sm:$0xff]
        %v276 = vld [vmem:[%s215 + $0x90] sm:$0xff]
        %v277 = vld [vmem:[%s215 + $0x98] sm:$0xff]
        %v278 = vld [vmem:[%s215 + $0xa0] sm:$0xff]
        %v279 = vld [vmem:[%s215 + $0xa8] sm:$0xff]
        %v280 = vld [vmem:[%s215 + $0xb0] sm:$0xff]
        %v281 = vld [vmem:[%s215 + $0xb8] sm:$0xff]
        %v282 = vld [vmem:[%s215 + $0xc0] sm:$0xff]
        %v283 = vld [vmem:[%s215 + $0xc8] sm:$0xff]
        %v284 = vld [vmem:[%s215 + $0xd0] sm:$0xff]
        %v285 = vld [vmem:[%s215 + $0xd8] sm:$0xff]
        %v286 = vld [vmem:[%s215 + $0xe0] sm:$0xff]
        %v287 = vld [vmem:[%s215 + $0xe8] sm:$0xff]
        %v288 = vld [vmem:[%s215 + $0xf0] sm:$0xff]
        %v289 = vld [vmem:[%s215 + $0xf8] sm:$0xff]
        %v290 = vld [vmem:[%s215 + $0x100] sm:$0xff]
        %v291 = vld [vmem:[%s215 + $0x108] sm:$0xff]
        %v292 = vld [vmem:[%s215 + $0x110] sm:$0xff]
        %v293 = vld [vmem:[%s215 + $0x118] sm:$0xff]
        %v294 = vld [vmem:[%s215 + $0x120] sm:$0xff]
        %v295 = vld [vmem:[%s215 + $0x128] sm:$0xff]
        %v296 = vld [vmem:[%s215 + $0x130] sm:$0xff]
        %v297 = vld [vmem:[%s215 + $0x138] sm:$0xff]
        %v298 = vld [vmem:[%s215 + $0x140] sm:$0xff]
        %v299 = vld [vmem:[%s215 + $0x148] sm:$0xff]
        %v300 = vld [vmem:[%s215 + $0x150] sm:$0xff]
        %v301 = vld [vmem:[%s215 + $0x158] sm:$0xff]
        %v302 = vld [vmem:[%s215 + $0x160] sm:$0xff]
        %v303 = vld [vmem:[%s215 + $0x168] sm:$0xff]
        %v304 = vld [vmem:[%s215 + $0x170] sm:$0xff]
        %v305 = vld [vmem:[%s215 + $0x178] sm:$0xff]
        %v306 = vld [vmem:[%s215 + $0x180] sm:$0xff]
        %v307 = vld [vmem:[%s215 + $0x188] sm:$0xff]
        %v308 = vld [vmem:[%s215 + $0x190] sm:$0xff]
        %v309 = vld [vmem:[%s215 + $0x198] sm:$0xff]
        %v310 = vld [vmem:[%s215 + $0x1a0] sm:$0xff]
        %v311 = vld [vmem:[%s215 + $0x1a8] sm:$0xff]
        %v312 = vld [vmem:[%s215 + $0x1b0] sm:$0xff]
        %v313 = vld [vmem:[%s215 + $0x1b8] sm:$0xff]
        %v314 = vld [vmem:[%s215 + $0x1c0] sm:$0xff]
        %v315 = vld [vmem:[%s215 + $0x1c8] sm:$0xff]
        %v316 = vld [vmem:[%s215 + $0x1d0] sm:$0xff]
        %v317 = vld [vmem:[%s215 + $0x1d8] sm:$0xff]
        %v318 = vld [vmem:[%s215 + $0x1e0] sm:$0xff]
        %v319 = vld [vmem:[%s215 + $0x1e8] sm:$0xff]
        %v320 = vld [vmem:[%s215 + $0x1f0] sm:$0xff]
        %v321 = vld [vmem:[%s215 + $0x1f8] sm:$0xff]
        %322 = vxpose.xlu0.b32.start [1/16] %v258, 128
        %323 = vxpose.xlu0.b32.cont [2/16] %v260, 128
        %324 = vxpose.xlu0.b32.cont [3/16] %v262, 128
        %325 = vxpose.xlu0.b32.cont [4/16] %v264, 128
        %326 = vxpose.xlu0.b32.cont [5/16] %v266, 128
        %327 = vxpose.xlu0.b32.cont [6/16] %v268, 128
        %328 = vxpose.xlu0.b32.cont [7/16] %v270, 128
        %329 = vxpose.xlu0.b32.cont [8/16] %v272, 128
        %330 = vxpose.xlu0.b32.cont [9/16] %v274, 128
        %331 = vxpose.xlu0.b32.cont [10/16] %v276, 128
        %332 = vxpose.xlu0.b32.cont [11/16] %v278, 128
        %333 = vxpose.xlu0.b32.cont [12/16] %v280, 128
        %334 = vxpose.xlu0.b32.cont [13/16] %v282, 128
        %335 = vxpose.xlu0.b32.cont [14/16] %v284, 128
        %336 = vxpose.xlu0.b32.cont [15/16] %v286, 128
        %337 = vxpose.xlu0.b32.end [16/16] %v288, 128
        %v338 = vpop.trf.xlu0
        %v339 = vpop.trf.xlu0
        %v340 = vpop.trf.xlu0
        %v341 = vpop.trf.xlu0
        %v342 = vpop.trf.xlu0
        %v343 = vpop.trf.xlu0
        %v344 = vpop.trf.xlu0
        %v345 = vpop.trf.xlu0
        %v346 = vpop.trf.xlu0
        %v347 = vpop.trf.xlu0
        %v348 = vpop.trf.xlu0
        %v349 = vpop.trf.xlu0
        %v350 = vpop.trf.xlu0
        %v351 = vpop.trf.xlu0
        %v352 = vpop.trf.xlu0
        %v353 = vpop.trf.xlu0
        %354 = vxpose.xlu0.b32.start [1/16] %v259, 128
        %355 = vxpose.xlu0.b32.cont [2/16] %v261, 128
        %356 = vxpose.xlu0.b32.cont [3/16] %v263, 128
        %357 = vxpose.xlu0.b32.cont [4/16] %v265, 128
        %358 = vxpose.xlu0.b32.cont [5/16] %v267, 128
        %359 = vxpose.xlu0.b32.cont [6/16] %v269, 128
        %360 = vxpose.xlu0.b32.cont [7/16] %v271, 128
        %361 = vxpose.xlu0.b32.cont [8/16] %v273, 128
        %362 = vxpose.xlu0.b32.cont [9/16] %v275, 128
        %363 = vxpose.xlu0.b32.cont [10/16] %v277, 128
        %364 = vxpose.xlu0.b32.cont [11/16] %v279, 128
        %365 = vxpose.xlu0.b32.cont [12/16] %v281, 128
        %366 = vxpose.xlu0.b32.cont [13/16] %v283, 128
        %367 = vxpose.xlu0.b32.cont [14/16] %v285, 128
        %368 = vxpose.xlu0.b32.cont [15/16] %v287, 128
        %369 = vxpose.xlu0.b32.end [16/16] %v289, 128
        %v370 = vpop.trf.xlu0
        %v371 = vpop.trf.xlu0
        %v372 = vpop.trf.xlu0
        %v373 = vpop.trf.xlu0
        %v374 = vpop.trf.xlu0
        %v375 = vpop.trf.xlu0
        %v376 = vpop.trf.xlu0
        %v377 = vpop.trf.xlu0
        %v378 = vpop.trf.xlu0
        %v379 = vpop.trf.xlu0
        %v380 = vpop.trf.xlu0
        %v381 = vpop.trf.xlu0
        %v382 = vpop.trf.xlu0
        %v383 = vpop.trf.xlu0
        %v384 = vpop.trf.xlu0
        %v385 = vpop.trf.xlu0
        %386 = vxpose.xlu0.b32.start [1/16] %v290, 128
        %387 = vxpose.xlu0.b32.cont [2/16] %v292, 128
        %388 = vxpose.xlu0.b32.cont [3/16] %v294, 128
        %389 = vxpose.xlu0.b32.cont [4/16] %v296, 128
        %390 = vxpose.xlu0.b32.cont [5/16] %v298, 128
        %391 = vxpose.xlu0.b32.cont [6/16] %v300, 128
        %392 = vxpose.xlu0.b32.cont [7/16] %v302, 128
        %393 = vxpose.xlu0.b32.cont [8/16] %v304, 128
        %394 = vxpose.xlu0.b32.cont [9/16] %v306, 128
        %395 = vxpose.xlu0.b32.cont [10/16] %v308, 128
        %396 = vxpose.xlu0.b32.cont [11/16] %v310, 128
        %397 = vxpose.xlu0.b32.cont [12/16] %v312, 128
        %398 = vxpose.xlu0.b32.cont [13/16] %v314, 128
        %399 = vxpose.xlu0.b32.cont [14/16] %v316, 128
        %400 = vxpose.xlu0.b32.cont [15/16] %v318, 128
        %401 = vxpose.xlu0.b32.end [16/16] %v320, 128
        %v402 = vpop.trf.xlu0
        %v403 = vpop.trf.xlu0
        %v404 = vpop.trf.xlu0
        %v405 = vpop.trf.xlu0
        %v406 = vpop.trf.xlu0
        %v407 = vpop.trf.xlu0
        %v408 = vpop.trf.xlu0
        %v409 = vpop.trf.xlu0
        %v410 = vpop.trf.xlu0
        %v411 = vpop.trf.xlu0
        %v412 = vpop.trf.xlu0
        %v413 = vpop.trf.xlu0
        %v414 = vpop.trf.xlu0
        %v415 = vpop.trf.xlu0
        %v416 = vpop.trf.xlu0
        %v417 = vpop.trf.xlu0
        %418 = vxpose.xlu0.b32.start [1/16] %v291, 128
        %419 = vxpose.xlu0.b32.cont [2/16] %v293, 128
        %420 = vxpose.xlu0.b32.cont [3/16] %v295, 128
        %421 = vxpose.xlu0.b32.cont [4/16] %v297, 128
        %422 = vxpose.xlu0.b32.cont [5/16] %v299, 128
        %423 = vxpose.xlu0.b32.cont [6/16] %v301, 128
        %424 = vxpose.xlu0.b32.cont [7/16] %v303, 128
        %425 = vxpose.xlu0.b32.cont [8/16] %v305, 128
        %426 = vxpose.xlu0.b32.cont [9/16] %v307, 128
        %427 = vxpose.xlu0.b32.cont [10/16] %v309, 128
        %428 = vxpose.xlu0.b32.cont [11/16] %v311, 128
        %429 = vxpose.xlu0.b32.cont [12/16] %v313, 128
        %430 = vxpose.xlu0.b32.cont [13/16] %v315, 128
        %431 = vxpose.xlu0.b32.cont [14/16] %v317, 128
        %432 = vxpose.xlu0.b32.cont [15/16] %v319, 128
        %433 = vxpose.xlu0.b32.end [16/16] %v321, 128
        %v434 = vpop.trf.xlu0
        %v435 = vpop.trf.xlu0
        %v436 = vpop.trf.xlu0
        %v437 = vpop.trf.xlu0
        %v438 = vpop.trf.xlu0
        %v439 = vpop.trf.xlu0
        %v440 = vpop.trf.xlu0
        %v441 = vpop.trf.xlu0
        %v442 = vpop.trf.xlu0
        %v443 = vpop.trf.xlu0
        %v444 = vpop.trf.xlu0
        %v445 = vpop.trf.xlu0
        %v446 = vpop.trf.xlu0
        %v447 = vpop.trf.xlu0
        %v448 = vpop.trf.xlu0
        %v449 = vpop.trf.xlu0
        %v450 = vld [vmem:[%s225] sm:$0xff]
        %v451 = vld [vmem:[%s225 + $0x8] sm:$0xff]
        %v452 = vld [vmem:[%s225 + $0x10] sm:$0xff]
        %v453 = vld [vmem:[%s225 + $0x18] sm:$0xff]
        %v454 = vld [vmem:[%s225 + $0x20] sm:$0xff]
        %v455 = vld [vmem:[%s225 + $0x28] sm:$0xff]
        %v456 = vld [vmem:[%s225 + $0x30] sm:$0xff]
        %v457 = vld [vmem:[%s225 + $0x38] sm:$0xff]
        %v458 = vld [vmem:[%s225 + $0x40] sm:$0xff]
        %v459 = vld [vmem:[%s225 + $0x48] sm:$0xff]
        %v460 = vld [vmem:[%s225 + $0x50] sm:$0xff]
        %v461 = vld [vmem:[%s225 + $0x58] sm:$0xff]
        %v462 = vld [vmem:[%s225 + $0x60] sm:$0xff]
        %v463 = vld [vmem:[%s225 + $0x68] sm:$0xff]
        %v464 = vld [vmem:[%s225 + $0x70] sm:$0xff]
        %v465 = vld [vmem:[%s225 + $0x78] sm:$0xff]
        %v466 = vld [vmem:[%s225 + $0x80] sm:$0xff]
        %v467 = vld [vmem:[%s225 + $0x88] sm:$0xff]
        %v468 = vld [vmem:[%s225 + $0x90] sm:$0xff]
        %v469 = vld [vmem:[%s225 + $0x98] sm:$0xff]
        %v470 = vld [vmem:[%s225 + $0xa0] sm:$0xff]
        %v471 = vld [vmem:[%s225 + $0xa8] sm:$0xff]
        %v472 = vld [vmem:[%s225 + $0xb0] sm:$0xff]
        %v473 = vld [vmem:[%s225 + $0xb8] sm:$0xff]
        %v474 = vld [vmem:[%s225 + $0xc0] sm:$0xff]
        %v475 = vld [vmem:[%s225 + $0xc8] sm:$0xff]
        %v476 = vld [vmem:[%s225 + $0xd0] sm:$0xff]
        %v477 = vld [vmem:[%s225 + $0xd8] sm:$0xff]
        %v478 = vld [vmem:[%s225 + $0xe0] sm:$0xff]
        %v479 = vld [vmem:[%s225 + $0xe8] sm:$0xff]
        %v480 = vld [vmem:[%s225 + $0xf0] sm:$0xff]
        %v481 = vld [vmem:[%s225 + $0xf8] sm:$0xff]
        %v482 = vld [vmem:[%s225 + $0x100] sm:$0xff]
        %v483 = vld [vmem:[%s225 + $0x108] sm:$0xff]
        %v484 = vld [vmem:[%s225 + $0x110] sm:$0xff]
        %v485 = vld [vmem:[%s225 + $0x118] sm:$0xff]
        %v486 = vld [vmem:[%s225 + $0x120] sm:$0xff]
        %v487 = vld [vmem:[%s225 + $0x128] sm:$0xff]
        %v488 = vld [vmem:[%s225 + $0x130] sm:$0xff]
        %v489 = vld [vmem:[%s225 + $0x138] sm:$0xff]
        %v490 = vld [vmem:[%s225 + $0x140] sm:$0xff]
        %v491 = vld [vmem:[%s225 + $0x148] sm:$0xff]
        %v492 = vld [vmem:[%s225 + $0x150] sm:$0xff]
        %v493 = vld [vmem:[%s225 + $0x158] sm:$0xff]
        %v494 = vld [vmem:[%s225 + $0x160] sm:$0xff]
        %v495 = vld [vmem:[%s225 + $0x168] sm:$0xff]
        %v496 = vld [vmem:[%s225 + $0x170] sm:$0xff]
        %v497 = vld [vmem:[%s225 + $0x178] sm:$0xff]
        %v498 = vld [vmem:[%s225 + $0x180] sm:$0xff]
        %v499 = vld [vmem:[%s225 + $0x188] sm:$0xff]
        %v500 = vld [vmem:[%s225 + $0x190] sm:$0xff]
        %v501 = vld [vmem:[%s225 + $0x198] sm:$0xff]
        %v502 = vld [vmem:[%s225 + $0x1a0] sm:$0xff]
        %v503 = vld [vmem:[%s225 + $0x1a8] sm:$0xff]
        %v504 = vld [vmem:[%s225 + $0x1b0] sm:$0xff]
        %v505 = vld [vmem:[%s225 + $0x1b8] sm:$0xff]
        %v506 = vld [vmem:[%s225 + $0x1c0] sm:$0xff]
        %v507 = vld [vmem:[%s225 + $0x1c8] sm:$0xff]
        %v508 = vld [vmem:[%s225 + $0x1d0] sm:$0xff]
        %v509 = vld [vmem:[%s225 + $0x1d8] sm:$0xff]
        %v510 = vld [vmem:[%s225 + $0x1e0] sm:$0xff]
        %v511 = vld [vmem:[%s225 + $0x1e8] sm:$0xff]
        %v512 = vld [vmem:[%s225 + $0x1f0] sm:$0xff]
        %v513 = vld [vmem:[%s225 + $0x1f8] sm:$0xff]
        %v514 = vadd.f32 %v338, %v450
        %v515 = vadd.f32 %v402, %v451
        %v516 = vadd.f32 %v339, %v452
        %v517 = vadd.f32 %v403, %v453
        %v518 = vadd.f32 %v340, %v454
        %v519 = vadd.f32 %v404, %v455
        %v520 = vadd.f32 %v341, %v456
        %v521 = vadd.f32 %v405, %v457
        %v522 = vadd.f32 %v342, %v458
        %v523 = vadd.f32 %v406, %v459
        %v524 = vadd.f32 %v343, %v460
        %v525 = vadd.f32 %v407, %v461
        %v526 = vadd.f32 %v344, %v462
        %v527 = vadd.f32 %v408, %v463
        %v528 = vadd.f32 %v345, %v464
        %v529 = vadd.f32 %v409, %v465
        %v530 = vadd.f32 %v346, %v466
        %v531 = vadd.f32 %v410, %v467
        %v532 = vadd.f32 %v347, %v468
        %v533 = vadd.f32 %v411, %v469
        %v534 = vadd.f32 %v348, %v470
        %v535 = vadd.f32 %v412, %v471
        %v536 = vadd.f32 %v349, %v472
        %v537 = vadd.f32 %v413, %v473
        %v538 = vadd.f32 %v350, %v474
        %v539 = vadd.f32 %v414, %v475
        %v540 = vadd.f32 %v351, %v476
        %v541 = vadd.f32 %v415, %v477
        %v542 = vadd.f32 %v352, %v478
        %v543 = vadd.f32 %v416, %v479
        %v544 = vadd.f32 %v353, %v480
        %v545 = vadd.f32 %v417, %v481
        %v546 = vadd.f32 %v370, %v482
        %v547 = vadd.f32 %v434, %v483
        %v548 = vadd.f32 %v371, %v484
        %v549 = vadd.f32 %v435, %v485
        %v550 = vadd.f32 %v372, %v486
        %v551 = vadd.f32 %v436, %v487
        %v552 = vadd.f32 %v373, %v488
        %v553 = vadd.f32 %v437, %v489
        %v554 = vadd.f32 %v374, %v490
        %v555 = vadd.f32 %v438, %v491
        %v556 = vadd.f32 %v375, %v492
        %v557 = vadd.f32 %v439, %v493
        %v558 = vadd.f32 %v376, %v494
        %v559 = vadd.f32 %v440, %v495
        %v560 = vadd.f32 %v377, %v496
        %v561 = vadd.f32 %v441, %v497
        %v562 = vadd.f32 %v378, %v498
        %v563 = vadd.f32 %v442, %v499
        %v564 = vadd.f32 %v379, %v500
        %v565 = vadd.f32 %v443, %v501
        %v566 = vadd.f32 %v380, %v502
        %v567 = vadd.f32 %v444, %v503
        %v568 = vadd.f32 %v381, %v504
        %v569 = vadd.f32 %v445, %v505
        %v570 = vadd.f32 %v382, %v506
        %v571 = vadd.f32 %v446, %v507
        %v572 = vadd.f32 %v383, %v508
        %v573 = vadd.f32 %v447, %v509
        %v574 = vadd.f32 %v384, %v510
        %v575 = vadd.f32 %v448, %v511
        %v576 = vadd.f32 %v385, %v512
        %v577 = vadd.f32 %v449, %v513
        %578 = vst [vmem:[%s251] sm:$0xff] %v514
        %579 = vst [vmem:[%s251 + $0x8] sm:$0xff] %v515
        %580 = vst [vmem:[%s251 + $0x10] sm:$0xff] %v516
        %581 = vst [vmem:[%s251 + $0x18] sm:$0xff] %v517
        %582 = vst [vmem:[%s251 + $0x20] sm:$0xff] %v518
        %583 = vst [vmem:[%s251 + $0x28] sm:$0xff] %v519
        %584 = vst [vmem:[%s251 + $0x30] sm:$0xff] %v520
        %585 = vst [vmem:[%s251 + $0x38] sm:$0xff] %v521
        %586 = vst [vmem:[%s251 + $0x40] sm:$0xff] %v522
        %587 = vst [vmem:[%s251 + $0x48] sm:$0xff] %v523
        %588 = vst [vmem:[%s251 + $0x50] sm:$0xff] %v524
        %589 = vst [vmem:[%s251 + $0x58] sm:$0xff] %v525
        %590 = vst [vmem:[%s251 + $0x60] sm:$0xff] %v526
        %591 = vst [vmem:[%s251 + $0x68] sm:$0xff] %v527
        %592 = vst [vmem:[%s251 + $0x70] sm:$0xff] %v528
        %593 = vst [vmem:[%s251 + $0x78] sm:$0xff] %v529
        %594 = vst [vmem:[%s251 + $0x80] sm:$0xff] %v530
        %595 = vst [vmem:[%s251 + $0x88] sm:$0xff] %v531
        %596 = vst [vmem:[%s251 + $0x90] sm:$0xff] %v532
        %597 = vst [vmem:[%s251 + $0x98] sm:$0xff] %v533
        %598 = vst [vmem:[%s251 + $0xa0] sm:$0xff] %v534
        %599 = vst [vmem:[%s251 + $0xa8] sm:$0xff] %v535
        %600 = vst [vmem:[%s251 + $0xb0] sm:$0xff] %v536
        %601 = vst [vmem:[%s251 + $0xb8] sm:$0xff] %v537
        %602 = vst [vmem:[%s251 + $0xc0] sm:$0xff] %v538
        %603 = vst [vmem:[%s251 + $0xc8] sm:$0xff] %v539
        %604 = vst [vmem:[%s251 + $0xd0] sm:$0xff] %v540
        %605 = vst [vmem:[%s251 + $0xd8] sm:$0xff] %v541
        %606 = vst [vmem:[%s251 + $0xe0] sm:$0xff] %v542
        %607 = vst [vmem:[%s251 + $0xe8] sm:$0xff] %v543
        %608 = vst [vmem:[%s251 + $0xf0] sm:$0xff] %v544
        %609 = vst [vmem:[%s251 + $0xf8] sm:$0xff] %v545
        %610 = vst [vmem:[%s251 + $0x100] sm:$0xff] %v546
        %611 = vst [vmem:[%s251 + $0x108] sm:$0xff] %v547
        %612 = vst [vmem:[%s251 + $0x110] sm:$0xff] %v548
        %613 = vst [vmem:[%s251 + $0x118] sm:$0xff] %v549
        %614 = vst [vmem:[%s251 + $0x120] sm:$0xff] %v550
        %615 = vst [vmem:[%s251 + $0x128] sm:$0xff] %v551
        %616 = vst [vmem:[%s251 + $0x130] sm:$0xff] %v552
        %617 = vst [vmem:[%s251 + $0x138] sm:$0xff] %v553
        %618 = vst [vmem:[%s251 + $0x140] sm:$0xff] %v554
        %619 = vst [vmem:[%s251 + $0x148] sm:$0xff] %v555
        %620 = vst [vmem:[%s251 + $0x150] sm:$0xff] %v556
        %621 = vst [vmem:[%s251 + $0x158] sm:$0xff] %v557
        %622 = vst [vmem:[%s251 + $0x160] sm:$0xff] %v558
        %623 = vst [vmem:[%s251 + $0x168] sm:$0xff] %v559
        %624 = vst [vmem:[%s251 + $0x170] sm:$0xff] %v560
        %625 = vst [vmem:[%s251 + $0x178] sm:$0xff] %v561
        %626 = vst [vmem:[%s251 + $0x180] sm:$0xff] %v562
        %627 = vst [vmem:[%s251 + $0x188] sm:$0xff] %v563
        %628 = vst [vmem:[%s251 + $0x190] sm:$0xff] %v564
        %629 = vst [vmem:[%s251 + $0x198] sm:$0xff] %v565
        %630 = vst [vmem:[%s251 + $0x1a0] sm:$0xff] %v566
        %631 = vst [vmem:[%s251 + $0x1a8] sm:$0xff] %v567
        %632 = vst [vmem:[%s251 + $0x1b0] sm:$0xff] %v568
        %633 = vst [vmem:[%s251 + $0x1b8] sm:$0xff] %v569
        %634 = vst [vmem:[%s251 + $0x1c0] sm:$0xff] %v570
        %635 = vst [vmem:[%s251 + $0x1c8] sm:$0xff] %v571
        %636 = vst [vmem:[%s251 + $0x1d0] sm:$0xff] %v572
        %637 = vst [vmem:[%s251 + $0x1d8] sm:$0xff] %v573
        %638 = vst [vmem:[%s251 + $0x1e0] sm:$0xff] %v574
        %639 = vst [vmem:[%s251 + $0x1e8] sm:$0xff] %v575
        %640 = vst [vmem:[%s251 + $0x1f0] sm:$0xff] %v576
        %641 = vst [vmem:[%s251 + $0x1f8] sm:$0xff] %v577
        %s642 = sand.u32 %s121, 1
        %s643 = scalar_lea.sflag [#allocation7], %s642
        %s644 = sand.u32 %s121, 1
        %s645 = smul.addr %s644, 512
        %s646 = scalar_lea.vmem [#allocation10], %s645
        // Predicated region
        $region37: #{tpu_custom_call.1} parent=27 // pred_check
          %p647 = pneg %p131
        $region38: #{tpu_custom_call.1} parent=27 // pred_check_branch
          %649 = sbr.rel (%p647) target = $region40
        $region39: #{tpu_custom_call.1} parent=27 // pred_region
          %s650 = sld [smem:[#allocation3 + %s42]]
          %s651 = smul.u32 32, %s41
          %653 = vsyncadd %s643, 0
          %s654 = smul.addr %s651, 2
          %s655 = smul.addr %s650, 64
          %s656 = sadd.s32 %s654, %s655
          %s657 = smul.addr %s656, 8
          %s658 = scalar_lea.hbm %s4, %s657
          %s659 = sshll.u32 %s646, 4
          %s660 = int_to_ptr.vmem [resolvable:$true] %s659
          %s661 = sshll.u32 %s658, 4
          %s662 = int_to_ptr.hbm [resolvable:$true] %s661
          %667 = dma.vmem_to_hbm [thread:$0]  %s660, 8192, %s662, %s643, 256, 256, 16
        $region40: #{tpu_custom_call.1} parent=27 // pred_fallthru
          _
      $region28: #{tpu_custom_call.1} parent=5 // pred_fallthru
        _
      %p668 = scmp.le.s32.totalorder 2, %s32
      // Predicated region
      $region41: #{tpu_custom_call.1} parent=5 // pred_check
        %p669 = pneg %p668
      $region42: #{tpu_custom_call.1} parent=5 // pred_check_branch
        %671 = sbr.rel (%p669) target = $region44
      $region43: #{tpu_custom_call.1} parent=5 // pred_region
        %s672 = ssub.s32 %s32, 2
        // Predicated region
        $region45: #{tpu_custom_call.1} parent=43 // pred_check
          %p673 = pneg %p137
        $region46: #{tpu_custom_call.1} parent=43 // pred_check_branch
          %675 = sbr.rel (%p673) target = $region48
        $region47: #{tpu_custom_call.1} parent=43 // pred_region
          %s676 = sand.u32 %s122, 1
          %s677 = scalar_lea.sflag [#allocation7], %s676
          %s678 = sand.u32 %s122, 1
          %s679 = smul.addr %s678, 512
          %s680 = scalar_lea.vmem [#allocation10], %s679
          %682 = dma.done %s677, 8192
        $region48: #{tpu_custom_call.1} parent=43 // pred_fallthru
          _
      $region44: #{tpu_custom_call.1} parent=5 // pred_fallthru
        _
    $region6: #{tpu_custom_call.1} parent=1 // loop_footer
      %s36 = sadd.s32 1, %s32
    $region7: #{tpu_custom_call.1} parent=1 // loop_footer_branch
      %31 = sbr.rel target = $region3
    $region8: #{tpu_custom_call.1} parent=1 // loop_exit
      _
    %683 = vsyncpa [#allocation6], 1
    %s684 = scalar_lea.sflag [#allocation6], 1
    %685 = vsyncpa %s684, 1
    %686 = vsyncpa [#allocation9], 1
    %s687 = scalar_lea.sflag [#allocation9], 1
    %688 = vsyncpa %s687, 1
    %689 = vsyncpa [#allocation7], 1
    %s690 = scalar_lea.sflag [#allocation7], 1
    %691 = vsyncpa %s690, 1

</llo_original>
